<compile_context>
chip_gen: v7x
topology: tpu7x:2x2x1
jax: 0.10.0
libtpu: 0.0.40
codegen_flags: <defaults>
</compile_context>

<pallas_src>
import functools

import jax
import jax.numpy as jnp
from jax.experimental import pallas as pl
from jax.experimental.pallas import tpu as pltpu

D_MODEL = 128
MAX_LEN = 5000


def make_positional_encoding_table(d_model: int = D_MODEL,
                                   max_len: int = MAX_LEN) -> jnp.ndarray:
    """Replicates the PyTorch __init__ buffer construction exactly.

    Returns pe of shape (max_len, 1, d_model), float32.
    """
    position = jnp.arange(0, max_len, dtype=jnp.float32)[:, None]          # (L, 1)
    div_term = jnp.exp(
        jnp.arange(0, d_model, 2, dtype=jnp.float32)
        * (-jnp.log(jnp.float32(10000.0)) / d_model)
    )                                                                       # (D/2,)
    angles = position * div_term                                            # (L, D/2)
    pe = jnp.zeros((max_len, d_model), dtype=jnp.float32)
    pe = pe.at[:, 0::2].set(jnp.sin(angles))
    pe = pe.at[:, 1::2].set(jnp.cos(angles))
    return pe[:, None, :]                                                   # (L, 1, D)


def _add_pe_kernel(x_ref, pe_ref, o_ref, *, batch: int):
    # x_ref: (TS, B*D)   pe_ref: (TS, D)   o_ref: (TS, B*D)
    pe = pe_ref[...]
    if batch > 1:
        # Broadcast over the batch axis of the flattened (S, B*D) view:
        # within a row the layout is [b=0 d=0..D-1, b=1 d=0..D-1, ...],
        # so tiling pe along lanes reproduces the (S, 1, D) broadcast.
        pe = jnp.concatenate([pe] * batch, axis=-1)
    o_ref[...] = x_ref[...] + pe


def _choose_seq_tile(S: int, B: int, D: int, *,
                     dtype_bytes: int = 4,
                     vmem_budget_bytes: int = 16 << 20,
                     max_rows: int = 1024) -> int:
    """Largest sequence tile whose double-buffered blocks fit the VMEM budget."""
    # Per sequence row: x-in block + out block (each B*D) + pe block (D),
    # each double-buffered by the pipeline.
    per_row = 2 * (2 * B * D + D) * dtype_bytes
    ts = min(S, max_rows, max(8, vmem_budget_bytes // per_row))
    if ts < S:
        ts = max(8, (ts // 8) * 8)     # keep the sublane dim a multiple of 8
    return int(ts)


def positional_encoding_forward(x: jnp.ndarray, pe: jnp.ndarray,
                                *, seq_tile: int | None = None) -> jnp.ndarray:
    """x: (S, B, D) float32; pe: (max_len, 1, D) float32 -> (S, B, D)."""
    S, B, D = x.shape
    pe_s = pe[:S, 0, :]                 # (S, D) — mirrors pe[:x.size(0), :]
    x2 = x.reshape(S, B * D)            # lane-dense 2D view (free, contiguous)

    TS = seq_tile if seq_tile is not None else _choose_seq_tile(S, B, D)
    grid = (pl.cdiv(S, TS),)

    out2 = pl.pallas_call(
        functools.partial(_add_pe_kernel, batch=B),
        out_shape=jax.ShapeDtypeStruct((S, B * D), x.dtype),
        grid_spec=pltpu.PrefetchScalarGridSpec(
            num_scalar_prefetch=0,
            grid=grid,
            in_specs=[
                pl.BlockSpec((TS, B * D), lambda i: (i, 0)),   # x slab
                pl.BlockSpec((TS, D), lambda i: (i, 0)),        # pe rows
            ],
            out_specs=pl.BlockSpec((TS, B * D), lambda i: (i, 0)),
        ),
        compiler_params=pltpu.CompilerParams(
            dimension_semantics=("parallel",),
            vmem_limit_bytes=32 << 20,
        ),
    )(x2, pe_s)

    return out2.reshape(S, B, D)


if __name__ == "__main__":
    key = jax.random.PRNGKey(0)
    pe = make_positional_encoding_table(D_MODEL, MAX_LEN)

    # Small shape consistent with the module: (seq_len, batch, d_model).
    seq_len, batch = 8, 2
    x = jax.random.normal(key, (seq_len, batch, D_MODEL), dtype=jnp.float32)
    out = jax.block_until_ready(positional_encoding_forward(x, pe))
    ref = x + pe[:seq_len]
    assert out.shape == (seq_len, batch, D_MODEL)
    assert jnp.allclose(out, ref, atol=1e-6, rtol=1e-6)

    # Second small check exercising the multi-step grid + ragged last block
    # (S=24 with a forced 16-row tile -> grid of 2, tail block masked).
    seq_len2 = 24
    x2 = jax.random.normal(jax.random.PRNGKey(1),
                           (seq_len2, batch, D_MODEL), dtype=jnp.float32)
    out2 = jax.block_until_ready(
        positional_encoding_forward(x2, pe, seq_tile=16))
    ref2 = x2 + pe[:seq_len2]
    assert out2.shape == (seq_len2, batch, D_MODEL)
    assert jnp.allclose(out2, ref2, atol=1e-6, rtol=1e-6)

    print("KERNEL_OK")
</pallas_src>

<mosaic_0001>
module attributes {stable_mosaic.version = 11 : i64} {
  func.func @_add_pe_kernel(%arg0: i32, %arg1: memref<8x256xf32, #tpu.memory_space<vmem>>, %arg2: memref<8x128xf32, #tpu.memory_space<vmem>>, %arg3: memref<8x256xf32, #tpu.memory_space<vmem>>) attributes {dimension_semantics = [#tpu.dimension_semantics<parallel>], iteration_bounds = array<i64: 1>, scalar_prefetch = 0 : i64, scratch_operands = 0 : i64, tpu.core_type = #tpu.core_type<tc>, window_params = [{transform_indices = @transform_0, window_bounds = array<i64: 8, 256>}, {transform_indices = @transform_1, window_bounds = array<i64: 8, 128>}, {transform_indices = @transform_2, window_bounds = array<i64: 8, 256>}]} {
    %c0 = arith.constant 0 : index
    %c0_0 = arith.constant 0 : index
    %0 = vector.load %arg2[%c0, %c0_0] : memref<8x128xf32, #tpu.memory_space<vmem>>, vector<8x128xf32>
    %1 = tpu.concatenate %0, %0 in 1 : vector<8x128xf32>, vector<8x128xf32> -> vector<8x256xf32>
    %c0_1 = arith.constant 0 : index
    %c0_2 = arith.constant 0 : index
    %2 = vector.load %arg1[%c0_1, %c0_2] : memref<8x256xf32, #tpu.memory_space<vmem>>, vector<8x256xf32>
    %3 = arith.addf %2, %1 : vector<8x256xf32>
    %c0_3 = arith.constant 0 : index
    %c0_4 = arith.constant 0 : index
    %4 = vector.load %arg3[%c0_3, %c0_4] : memref<8x256xf32, #tpu.memory_space<vmem>>, vector<8x256xf32>
    tpu.vector_store %arg3[%c0_3, %c0_4], %3 {strides = array<i32>} : memref<8x256xf32, #tpu.memory_space<vmem>>, vector<8x256xf32>,
    return
  }
  func.func @transform_0(%arg0: i32) -> (i32, i32) {
    %c0_i32 = arith.constant 0 : i32
    %c0_i32_0 = arith.constant 0 : i32
    return %arg0, %c0_i32 : i32, i32
  }
  func.func @transform_1(%arg0: i32) -> (i32, i32) {
    %c0_i32 = arith.constant 0 : i32
    %c0_i32_0 = arith.constant 0 : i32
    return %arg0, %c0_i32 : i32, i32
  }
  func.func @transform_2(%arg0: i32) -> (i32, i32) {
    %c0_i32 = arith.constant 0 : i32
    %c0_i32_0 = arith.constant 0 : i32
    return %arg0, %c0_i32 : i32, i32
  }
}

</mosaic_0001>

<llo_original>
// kernel: tpu_custom_call.1
$region0: #{tpu_custom_call.1}
  #allocation0 [shape = 'u32[]', space=smem, size = 0x4, offset = 0x4, fixed_abs, tag = 'smem constant byte address 0x4 - core index']
  #allocation1 [shape = 'u32[144,128]{1,0:T(1,128)}', space=vmem, size = 0x12000, scoped, tag = 'internal scratch']
  %s0 = inlined_call_operand.hbm [shape: f32[8,256], index: 0, kind: input, shape index: {}]
  %s1 = inlined_call_operand.hbm [shape: f32[8,128], index: 1, kind: input, shape index: {}]
  %s2 = inlined_call_operand.hbm [shape: f32[8,256], index: 2, kind: output, shape index: {}]
  %s3 = sld [smem:[#allocation0]]
  $region26: #{tpu_custom_call.1} parent=0
    _
  %s5 = ssub.s32 1, %s3
  %s6 = scalar_select 0, %s5, %s3
  $region1: #{tpu_custom_call.1} parent=0
    #allocation2 [shape = 'u8[8192]{0}', space=vmem, size = 0x2000, scoped, tag = 'input window, operand 0, single buffered']
    #allocation3 [shape = 's32[1]{0}', space=sflag, size = 0x4, scoped, tag = 'scoped memory for tpu_custom_call.1']
    #allocation4 [shape = 's32[1]{0}', space=sflag, size = 0x4, scoped, tag = 'scoped memory for tpu_custom_call.1']
    #allocation5 [shape = 'u8[4096]{0}', space=vmem, size = 0x1000, scoped, tag = 'input window, operand 1, single buffered']
    #allocation6 [shape = 's32[1]{0}', space=sflag, size = 0x4, scoped, tag = 'scoped memory for tpu_custom_call.1']
    #allocation7 [shape = 'u8[8192]{0}', space=vmem, size = 0x2000, scoped, tag = 'output window, operand 0, single buffered']
    %7 = vsyncpa [#allocation3], 0
    %8 = vsyncpa [#allocation6], 0
    %9 = vsyncpa [#allocation4], 0
    // Predicated region
    $region2: #{tpu_custom_call.1} parent=1 // pred_check
      _
    $region3: #{tpu_custom_call.1} parent=1 // pred_check_branch
      %11 = sbr.rel (0) target = $region5
    $region4: #{tpu_custom_call.1} parent=1 // pred_region
      %s13 = ssub.s32 256, 256
      %14 = vsyncadd [#allocation3], %s13
      %s16 = sshll.u32 [#allocation2], 4
      %s17 = int_to_ptr.vmem [resolvable:$true] %s16
      %19 = dma.hbm_to_vmem [thread:$0]  %s0, 256, %s17, [#allocation3]
    $region5: #{tpu_custom_call.1} parent=1 // pred_fallthru
      _
    // Predicated region
    $region6: #{tpu_custom_call.1} parent=1 // pred_check
      _
    $region7: #{tpu_custom_call.1} parent=1 // pred_check_branch
      %21 = sbr.rel (0) target = $region9
    $region8: #{tpu_custom_call.1} parent=1 // pred_region
      %s23 = ssub.s32 128, 128
      %24 = vsyncadd [#allocation6], %s23
      %s26 = sshll.u32 [#allocation5], 4
      %s27 = int_to_ptr.vmem [resolvable:$true] %s26
      %29 = dma.hbm_to_vmem [thread:$0]  %s1, 128, %s27, [#allocation6]
    $region9: #{tpu_custom_call.1} parent=1 // pred_fallthru
      _
    // Predicated region
    $region10: #{tpu_custom_call.1} parent=1 // pred_check
      _
    $region11: #{tpu_custom_call.1} parent=1 // pred_check_branch
      %31 = sbr.rel (0) target = $region13
    $region12: #{tpu_custom_call.1} parent=1 // pred_region
      %32 = dma.done [#allocation3], 256
    $region13: #{tpu_custom_call.1} parent=1 // pred_fallthru
      _
    // Predicated region
    $region14: #{tpu_custom_call.1} parent=1 // pred_check
      _
    $region15: #{tpu_custom_call.1} parent=1 // pred_check_branch
      %34 = sbr.rel (0) target = $region17
    $region16: #{tpu_custom_call.1} parent=1 // pred_region
      %35 = dma.done [#allocation6], 128
    $region17: #{tpu_custom_call.1} parent=1 // pred_fallthru
      _
    %v36 = vld [vmem:[#allocation5] sm:$0xff]
    %v37 = vld [vmem:[#allocation2] sm:$0xff]
    %v38 = vld [vmem:[#allocation2 + $0x8] sm:$0xff]
    %v39 = vadd.f32 %v37, %v36
    %v40 = vadd.f32 %v38, %v36
    %41 = vst [vmem:[#allocation7] sm:$0xff] %v39
    %42 = vst [vmem:[#allocation7 + $0x8] sm:$0xff] %v40
    // Predicated region
    $region18: #{tpu_custom_call.1} parent=1 // pred_check
      _
    $region19: #{tpu_custom_call.1} parent=1 // pred_check_branch
      %44 = sbr.rel (0) target = $region21
    $region20: #{tpu_custom_call.1} parent=1 // pred_region
      %s46 = ssub.s32 256, 256
      %47 = vsyncadd [#allocation4], %s46
      %s49 = sshll.u32 [#allocation7], 4
      %s50 = int_to_ptr.vmem [resolvable:$true] %s49
      %52 = dma.vmem_to_hbm [thread:$0]  %s50, 256, %s2, [#allocation4]
    $region21: #{tpu_custom_call.1} parent=1 // pred_fallthru
      _
    // Predicated region
    $region22: #{tpu_custom_call.1} parent=1 // pred_check
      _
    $region23: #{tpu_custom_call.1} parent=1 // pred_check_branch
      %54 = sbr.rel (0) target = $region25
    $region24: #{tpu_custom_call.1} parent=1 // pred_region
      %55 = dma.done [#allocation4], 256
    $region25: #{tpu_custom_call.1} parent=1 // pred_fallthru
      _
    %56 = vsyncpa [#allocation3], 1
    %57 = vsyncpa [#allocation6], 1
    %58 = vsyncpa [#allocation4], 1

</llo_original>
